<compile_context>
chip_gen: v7x
topology: tpu7x:2x2x1
jax: 0.10.0
libtpu: 0.0.40
codegen_flags: <defaults>
</compile_context>

<pallas_src>
import functools

import jax
import jax.numpy as jnp
from jax.experimental import pallas as pl
from jax.experimental.pallas import tpu as pltpu


# ----------------------------------------------------------------------------
# Kernel: one block of `G` batch elements per grid step.
# ----------------------------------------------------------------------------
def _attention_kernel(
    x_ref,       # (G, N, C)   input tokens (f32)
    wqkv_ref,    # (C, 3C)     qkv weight, x@W layout, bf16
    wproj_ref,   # (C, C)      proj weight, x@W layout, bf16
    bproj_ref,   # (1, C)      proj bias, f32
    o_ref,       # (G, N, C)   projected output
    attn_ref,    # (H, G, N, N) attention probabilities
    *,
    num_heads,
    head_dim,
    scale,
):
    G, N, C = x_ref.shape
    H, Dh = num_heads, head_dim

    # --- QKV projection: one MXU matmul over all G*N rows (bf16 in, f32 acc) ---
    xb = x_ref[...].reshape(G * N, C).astype(jnp.bfloat16)
    qkv = jnp.dot(xb, wqkv_ref[...],
                  preferred_element_type=jnp.float32)        # (G*N, 3C) f32

    # --- gather heads into one batched layout (H*G, N, Dh) ---
    def gather_heads(base):
        cols = [qkv[:, base + h * Dh: base + (h + 1) * Dh] for h in range(H)]
        stacked = jnp.stack(cols, axis=0)                    # (H, G*N, Dh)
        return stacked.reshape(H * G, N, Dh).astype(jnp.bfloat16)

    q = gather_heads(0 * C)
    k = gather_heads(1 * C)
    v = gather_heads(2 * C)

    # --- batched attention over (head, group): two MXU dot_generals total ---
    s = jnp.einsum("bnd,bmd->bnm", q, k,
                   preferred_element_type=jnp.float32) * scale   # (H*G, N, N)
    s = s - jnp.max(s, axis=-1, keepdims=True)
    p = jnp.exp(s)
    denom = jnp.sum(p, axis=-1, keepdims=True)
    p = p * pl.reciprocal(denom, approx=True)                    # softmax, f32

    attn_ref[...] = p.reshape(H, G, N, N).astype(attn_ref.dtype)

    o = jnp.einsum("bnm,bmd->bnd", p.astype(jnp.bfloat16), v,
                   preferred_element_type=jnp.float32)           # (H*G, N, Dh)

    # --- merge heads back to (G*N, C) and apply output projection ---
    o = o.reshape(H, G * N, Dh)
    o_cat = jnp.concatenate([o[h] for h in range(H)], axis=-1)   # (G*N, C)
    out = jnp.dot(o_cat.astype(jnp.bfloat16), wproj_ref[...],
                  preferred_element_type=jnp.float32) + bproj_ref[...]
    o_ref[...] = out.reshape(G, N, C).astype(o_ref.dtype)


# ----------------------------------------------------------------------------
# Wrapper
# ----------------------------------------------------------------------------
def _pick_block_b(B, N):
    """Blocks with >=128 rows if possible, but keep >=2 grid steps (v7x 2 TCs)."""
    divisors = [d for d in range(1, B + 1) if B % d == 0]
    multi = [d for d in divisors if B // d >= 2]
    pool = multi if multi else divisors
    for d in pool:
        if d * N >= 128:
            return d
    return pool[-1]


def attention(x, wqkv, wproj, bproj, *, num_heads, block_b=None):
    """x: (B, N, C).  wqkv: (C, 3C), wproj: (C, C) in x@W layout.

    Returns (out, attn) with out: (B, N, C), attn: (B, H, N, N).
    """
    B, N, C = x.shape
    H = num_heads
    Dh = C // H
    scale = Dh ** -0.5

    if block_b is None:
        block_b = _pick_block_b(B, N)
    assert B % block_b == 0
    grid = (B // block_b,)

    kernel = functools.partial(
        _attention_kernel, num_heads=H, head_dim=Dh, scale=scale)

    wqkv_b = wqkv.astype(jnp.bfloat16)
    wproj_b = wproj.astype(jnp.bfloat16)
    bproj2 = bproj.reshape(1, C).astype(jnp.float32)

    const2 = lambda i: (0, 0)
    out, attn_hb = pl.pallas_call(
        kernel,
        out_shape=(
            jax.ShapeDtypeStruct((B, N, C), x.dtype),
            jax.ShapeDtypeStruct((H, B, N, N), x.dtype),
        ),
        grid=grid,
        in_specs=[
            pl.BlockSpec((block_b, N, C), lambda i: (i, 0, 0)),   # x
            pl.BlockSpec((C, 3 * C), const2),                     # wqkv (resident)
            pl.BlockSpec((C, C), const2),                         # wproj (resident)
            pl.BlockSpec((1, C), const2),                         # bproj (resident)
        ],
        out_specs=[
            pl.BlockSpec((block_b, N, C), lambda i: (i, 0, 0)),
            pl.BlockSpec((H, block_b, N, N), lambda i: (0, i, 0, 0)),
        ],
        compiler_params=pltpu.CompilerParams(
            dimension_semantics=("parallel",)),
    )(x, wqkv_b, wproj_b, bproj2)

    attn = jnp.transpose(attn_hb, (1, 0, 2, 3))   # (B, H, N, N), cheap XLA op
    return out, attn


# ----------------------------------------------------------------------------
# Plain-JAX reference (mirrors the PyTorch forward, eval mode)
# ----------------------------------------------------------------------------
def reference(x, wqkv, wproj, bproj, *, num_heads):
    B, N, C = x.shape
    H = num_heads
    Dh = C // H
    scale = Dh ** -0.5
    qkv = (x @ wqkv).reshape(B, N, 3, H, Dh).transpose(2, 0, 3, 1, 4)
    q, k, v = qkv[0], qkv[1], qkv[2]
    attn = (q @ jnp.swapaxes(k, -2, -1)) * scale
    attn = jax.nn.softmax(attn, axis=-1)
    o = (attn @ v).transpose(0, 2, 1, 3).reshape(B, N, C)
    o = o @ wproj + bproj
    return o, attn


# ----------------------------------------------------------------------------
if __name__ == "__main__":
    # Small shapes consistent with the module: B=2, N=8 tokens, C=32, 4 heads.
    B, N, C, H = 2, 8, 32, 4

    key = jax.random.PRNGKey(0)
    k0, k1, k2, k3 = jax.random.split(key, 4)
    x = jax.random.normal(k0, (B, N, C), dtype=jnp.float32)
    # qkv_bias=False (module default); proj has bias.  Weights in x@W layout.
    wqkv = 0.1 * jax.random.normal(k1, (C, 3 * C), jnp.float32)
    wproj = 0.1 * jax.random.normal(k2, (C, C), jnp.float32)
    bproj = 0.1 * jax.random.normal(k3, (C,), jnp.float32)

    out, attn = attention(x, wqkv, wproj, bproj, num_heads=H)
    out = jax.block_until_ready(out)
    attn = jax.block_until_ready(attn)

    ref_out, ref_attn = reference(x, wqkv, wproj, bproj, num_heads=H)
    assert out.shape == (B, N, C), out.shape
    assert attn.shape == (B, H, N, N), attn.shape
    # bf16 matmul operands + approx reciprocal -> loose-ish tolerance vs f32 ref
    assert jnp.allclose(out, ref_out, atol=2e-2, rtol=2e-2), (
        float(jnp.max(jnp.abs(out - ref_out))))
    assert jnp.allclose(attn, ref_attn, atol=2e-2, rtol=2e-2), (
        float(jnp.max(jnp.abs(attn - ref_attn))))

    print("KERNEL_OK")
</pallas_src>

<mosaic_0001>
module attributes {stable_mosaic.version = 11 : i64} {
  func.func @_attention_kernel(%arg0: i32, %arg1: memref<1x8x32xf32, #tpu.memory_space<vmem>>, %arg2: memref<32x96xbf16, #tpu.memory_space<vmem>>, %arg3: memref<32x32xbf16, #tpu.memory_space<vmem>>, %arg4: memref<1x32xf32, #tpu.memory_space<vmem>>, %arg5: memref<1x8x32xf32, #tpu.memory_space<vmem>>, %arg6: memref<4x1x8x8xf32, #tpu.memory_space<vmem>>) attributes {dimension_semantics = [#tpu.dimension_semantics<parallel>], iteration_bounds = array<i64: 2>, scalar_prefetch = 0 : i64, scratch_operands = 0 : i64, tpu.core_type = #tpu.core_type<tc>, window_params = [{transform_indices = @transform_0, window_bounds = array<i64: 1, 8, 32>}, {pipeline_mode = #tpu.pipeline_mode<synchronous>, transform_indices = @transform_1, window_bounds = array<i64: 32, 96>}, {pipeline_mode = #tpu.pipeline_mode<synchronous>, transform_indices = @transform_2, window_bounds = array<i64: 32, 32>}, {pipeline_mode = #tpu.pipeline_mode<synchronous>, transform_indices = @transform_3, window_bounds = array<i64: 1, 32>}, {transform_indices = @transform_4, window_bounds = array<i64: 1, 8, 32>}, {transform_indices = @transform_5, window_bounds = array<i64: 4, 1, 8, 8>}]} {
    %c0 = arith.constant 0 : index
    %c0_0 = arith.constant 0 : index
    %c0_1 = arith.constant 0 : index
    %0 = vector.load %arg1[%c0, %c0_0, %c0_1] : memref<1x8x32xf32, #tpu.memory_space<vmem>>, vector<1x8x32xf32>
    %1 = vector.shape_cast %0 : vector<1x8x32xf32> to vector<8x32xf32>
    %2 = arith.truncf %1 : vector<8x32xf32> to vector<8x32xbf16>
    %c0_2 = arith.constant 0 : index
    %c0_3 = arith.constant 0 : index
    %3 = vector.load %arg2[%c0_2, %c0_3] : memref<32x96xbf16, #tpu.memory_space<vmem>>, vector<32x96xbf16>
    %cst = arith.constant dense<0.000000e+00> : vector<8x96xf32>
    %4 = tpu.matmul %2, %3, %cst {dimension_numbers = #tpu.dot_dimension_numbers<[1], [0], [0], [1], [0, 0, 1, 1], [], []>} : vector<8x32xbf16>, vector<32x96xbf16>, vector<8x96xf32> -> vector<8x96xf32>
    %5 = vector.extract_strided_slice %4 {offsets = [0, 0], sizes = [8, 8], strides = [1, 1]} : vector<8x96xf32> to vector<8x8xf32>
    %6 = vector.extract_strided_slice %4 {offsets = [0, 8], sizes = [8, 8], strides = [1, 1]} : vector<8x96xf32> to vector<8x8xf32>
    %7 = vector.extract_strided_slice %4 {offsets = [0, 16], sizes = [8, 8], strides = [1, 1]} : vector<8x96xf32> to vector<8x8xf32>
    %8 = vector.extract_strided_slice %4 {offsets = [0, 24], sizes = [8, 8], strides = [1, 1]} : vector<8x96xf32> to vector<8x8xf32>
    %9 = vector.shape_cast %5 : vector<8x8xf32> to vector<1x8x8xf32>
    %10 = vector.shape_cast %6 : vector<8x8xf32> to vector<1x8x8xf32>
    %11 = vector.shape_cast %7 : vector<8x8xf32> to vector<1x8x8xf32>
    %12 = vector.shape_cast %8 : vector<8x8xf32> to vector<1x8x8xf32>
    %13 = tpu.concatenate %9, %10, %11, %12 in 0 : vector<1x8x8xf32>, vector<1x8x8xf32>, vector<1x8x8xf32>, vector<1x8x8xf32> -> vector<4x8x8xf32>
    %14 = arith.truncf %13 : vector<4x8x8xf32> to vector<4x8x8xbf16>
    %15 = vector.extract_strided_slice %4 {offsets = [0, 32], sizes = [8, 8], strides = [1, 1]} : vector<8x96xf32> to vector<8x8xf32>
    %16 = vector.extract_strided_slice %4 {offsets = [0, 40], sizes = [8, 8], strides = [1, 1]} : vector<8x96xf32> to vector<8x8xf32>
    %17 = vector.extract_strided_slice %4 {offsets = [0, 48], sizes = [8, 8], strides = [1, 1]} : vector<8x96xf32> to vector<8x8xf32>
    %18 = vector.extract_strided_slice %4 {offsets = [0, 56], sizes = [8, 8], strides = [1, 1]} : vector<8x96xf32> to vector<8x8xf32>
    %19 = vector.shape_cast %15 : vector<8x8xf32> to vector<1x8x8xf32>
    %20 = vector.shape_cast %16 : vector<8x8xf32> to vector<1x8x8xf32>
    %21 = vector.shape_cast %17 : vector<8x8xf32> to vector<1x8x8xf32>
    %22 = vector.shape_cast %18 : vector<8x8xf32> to vector<1x8x8xf32>
    %23 = tpu.concatenate %19, %20, %21, %22 in 0 : vector<1x8x8xf32>, vector<1x8x8xf32>, vector<1x8x8xf32>, vector<1x8x8xf32> -> vector<4x8x8xf32>
    %24 = arith.truncf %23 : vector<4x8x8xf32> to vector<4x8x8xbf16>
    %25 = vector.extract_strided_slice %4 {offsets = [0, 64], sizes = [8, 8], strides = [1, 1]} : vector<8x96xf32> to vector<8x8xf32>
    %26 = vector.extract_strided_slice %4 {offsets = [0, 72], sizes = [8, 8], strides = [1, 1]} : vector<8x96xf32> to vector<8x8xf32>
    %27 = vector.extract_strided_slice %4 {offsets = [0, 80], sizes = [8, 8], strides = [1, 1]} : vector<8x96xf32> to vector<8x8xf32>
    %28 = vector.extract_strided_slice %4 {offsets = [0, 88], sizes = [8, 8], strides = [1, 1]} : vector<8x96xf32> to vector<8x8xf32>
    %29 = vector.shape_cast %25 : vector<8x8xf32> to vector<1x8x8xf32>
    %30 = vector.shape_cast %26 : vector<8x8xf32> to vector<1x8x8xf32>
    %31 = vector.shape_cast %27 : vector<8x8xf32> to vector<1x8x8xf32>
    %32 = vector.shape_cast %28 : vector<8x8xf32> to vector<1x8x8xf32>
    %33 = tpu.concatenate %29, %30, %31, %32 in 0 : vector<1x8x8xf32>, vector<1x8x8xf32>, vector<1x8x8xf32>, vector<1x8x8xf32> -> vector<4x8x8xf32>
    %34 = arith.truncf %33 : vector<4x8x8xf32> to vector<4x8x8xbf16>
    "tpu.trace_start"() <{level = 10 : i32, message = "bnd,bmd->bnm"}> : () -> ()
    %cst_4 = arith.constant dense<0.000000e+00> : vector<4x8x8xf32>
    %35 = tpu.matmul %14, %24, %cst_4 {dimension_numbers = #tpu.dot_dimension_numbers<[2], [2], [1], [1], [0, 0, 0, 1, 1, 1], [0], [0]>} : vector<4x8x8xbf16>, vector<4x8x8xbf16>, vector<4x8x8xf32> -> vector<4x8x8xf32>
    "tpu.trace_stop"() : () -> ()
    %cst_5 = arith.constant 0.353553385 : f32
    %36 = vector.broadcast %cst_5 : f32 to vector<4x8x8xf32>
    %37 = arith.mulf %35, %36 : vector<4x8x8xf32>
    %cst_6 = arith.constant dense<0xFF800000> : vector<4x8xf32>
    %38 = vector.multi_reduction <maximumf>, %37, %cst_6 [2] : vector<4x8x8xf32> to vector<4x8xf32>
    %39 = vector.shape_cast %38 : vector<4x8xf32> to vector<4x8x1xf32>
    %40 = vector.broadcast %39 : vector<4x8x1xf32> to vector<4x8x8xf32>
    %41 = arith.subf %37, %40 : vector<4x8x8xf32>
    %42 = math.exp %41 : vector<4x8x8xf32>
    %cst_7 = arith.constant dense<0.000000e+00> : vector<4x8xf32>
    %43 = vector.multi_reduction <add>, %42, %cst_7 [2] : vector<4x8x8xf32> to vector<4x8xf32>
    %44 = vector.shape_cast %43 : vector<4x8xf32> to vector<4x8x1xf32>
    %45 = tpu.reciprocal %44 {approx = true} : vector<4x8x1xf32> -> vector<4x8x1xf32>
    %46 = vector.broadcast %45 : vector<4x8x1xf32> to vector<4x8x8xf32>
    %47 = arith.mulf %42, %46 : vector<4x8x8xf32>
    %48 = vector.shape_cast %47 : vector<4x8x8xf32> to vector<4x1x8x8xf32>
    %c0_8 = arith.constant 0 : index
    %c0_9 = arith.constant 0 : index
    %c0_10 = arith.constant 0 : index
    %c0_11 = arith.constant 0 : index
    %49 = vector.load %arg6[%c0_8, %c0_9, %c0_10, %c0_11] : memref<4x1x8x8xf32, #tpu.memory_space<vmem>>, vector<4x1x8x8xf32>
    tpu.vector_store %arg6[%c0_8, %c0_9, %c0_10, %c0_11], %48 {strides = array<i32>} : memref<4x1x8x8xf32, #tpu.memory_space<vmem>>, vector<4x1x8x8xf32>,
    %50 = arith.truncf %47 : vector<4x8x8xf32> to vector<4x8x8xbf16>
    "tpu.trace_start"() <{level = 10 : i32, message = "bnm,bmd->bnd"}> : () -> ()
    %cst_12 = arith.constant dense<0.000000e+00> : vector<4x8x8xf32>
    %51 = tpu.matmul %50, %34, %cst_12 {dimension_numbers = #tpu.dot_dimension_numbers<[2], [1], [1], [2], [0, 0, 0, 1, 1, 2], [0], [0]>} : vector<4x8x8xbf16>, vector<4x8x8xbf16>, vector<4x8x8xf32> -> vector<4x8x8xf32>
    "tpu.trace_stop"() : () -> ()
    %52 = vector.extract_strided_slice %51 {offsets = [0, 0, 0], sizes = [1, 8, 8], strides = [1, 1, 1]} : vector<4x8x8xf32> to vector<1x8x8xf32>
    %53 = vector.shape_cast %52 : vector<1x8x8xf32> to vector<8x8xf32>
    %54 = vector.extract_strided_slice %51 {offsets = [1, 0, 0], sizes = [1, 8, 8], strides = [1, 1, 1]} : vector<4x8x8xf32> to vector<1x8x8xf32>
    %55 = vector.shape_cast %54 : vector<1x8x8xf32> to vector<8x8xf32>
    %56 = vector.extract_strided_slice %51 {offsets = [2, 0, 0], sizes = [1, 8, 8], strides = [1, 1, 1]} : vector<4x8x8xf32> to vector<1x8x8xf32>
    %57 = vector.shape_cast %56 : vector<1x8x8xf32> to vector<8x8xf32>
    %58 = vector.extract_strided_slice %51 {offsets = [3, 0, 0], sizes = [1, 8, 8], strides = [1, 1, 1]} : vector<4x8x8xf32> to vector<1x8x8xf32>
    %59 = vector.shape_cast %58 : vector<1x8x8xf32> to vector<8x8xf32>
    %60 = tpu.concatenate %53, %55, %57, %59 in 1 : vector<8x8xf32>, vector<8x8xf32>, vector<8x8xf32>, vector<8x8xf32> -> vector<8x32xf32>
    %61 = arith.truncf %60 : vector<8x32xf32> to vector<8x32xbf16>
    %c0_13 = arith.constant 0 : index
    %c0_14 = arith.constant 0 : index
    %62 = vector.load %arg3[%c0_13, %c0_14] : memref<32x32xbf16, #tpu.memory_space<vmem>>, vector<32x32xbf16>
    %cst_15 = arith.constant dense<0.000000e+00> : vector<8x32xf32>
    %63 = tpu.matmul %61, %62, %cst_15 {dimension_numbers = #tpu.dot_dimension_numbers<[1], [0], [0], [1], [0, 0, 1, 1], [], []>} : vector<8x32xbf16>, vector<32x32xbf16>, vector<8x32xf32> -> vector<8x32xf32>
    %c0_16 = arith.constant 0 : index
    %c0_17 = arith.constant 0 : index
    %64 = vector.load %arg4[%c0_16, %c0_17] : memref<1x32xf32, #tpu.memory_space<vmem>>, vector<1x32xf32>
    %65 = vector.broadcast %64 : vector<1x32xf32> to vector<8x32xf32>
    %66 = arith.addf %63, %65 : vector<8x32xf32>
    %67 = vector.shape_cast %66 : vector<8x32xf32> to vector<1x8x32xf32>
    %c0_18 = arith.constant 0 : index
    %c0_19 = arith.constant 0 : index
    %c0_20 = arith.constant 0 : index
    %68 = vector.load %arg5[%c0_18, %c0_19, %c0_20] : memref<1x8x32xf32, #tpu.memory_space<vmem>>, vector<1x8x32xf32>
    tpu.vector_store %arg5[%c0_18, %c0_19, %c0_20], %67 {strides = array<i32>} : memref<1x8x32xf32, #tpu.memory_space<vmem>>, vector<1x8x32xf32>,
    return
  }
  func.func @transform_0(%arg0: i32) -> (i32, i32, i32) {
    %c0_i32 = arith.constant 0 : i32
    %c0_i32_0 = arith.constant 0 : i32
    %c0_i32_1 = arith.constant 0 : i32
    return %arg0, %c0_i32, %c0_i32_0 : i32, i32, i32
  }
  func.func @transform_1(%arg0: i32) -> (i32, i32) {
    %c0_i32 = arith.constant 0 : i32
    %c0_i32_0 = arith.constant 0 : i32
    %c0_i32_1 = arith.constant 0 : i32
    return %c0_i32, %c0_i32_0 : i32, i32
  }
  func.func @transform_2(%arg0: i32) -> (i32, i32) {
    %c0_i32 = arith.constant 0 : i32
    %c0_i32_0 = arith.constant 0 : i32
    %c0_i32_1 = arith.constant 0 : i32
    return %c0_i32, %c0_i32_0 : i32, i32
  }
  func.func @transform_3(%arg0: i32) -> (i32, i32) {
    %c0_i32 = arith.constant 0 : i32
    %c0_i32_0 = arith.constant 0 : i32
    %c0_i32_1 = arith.constant 0 : i32
    return %c0_i32, %c0_i32_0 : i32, i32
  }
  func.func @transform_4(%arg0: i32) -> (i32, i32, i32) {
    %c0_i32 = arith.constant 0 : i32
    %c0_i32_0 = arith.constant 0 : i32
    %c0_i32_1 = arith.constant 0 : i32
    return %arg0, %c0_i32, %c0_i32_0 : i32, i32, i32
  }
  func.func @transform_5(%arg0: i32) -> (i32, i32, i32, i32) {
    %c0_i32 = arith.constant 0 : i32
    %c0_i32_0 = arith.constant 0 : i32
    %c0_i32_1 = arith.constant 0 : i32
    %c0_i32_2 = arith.constant 0 : i32
    return %c0_i32, %arg0, %c0_i32_0, %c0_i32_1 : i32, i32, i32, i32
  }
}

</mosaic_0001>

<llo_original>
// kernel: tpu_custom_call.1
$region0: #{tpu_custom_call.1}
  #allocation0 [shape = 'u32[]', space=smem, size = 0x4, offset = 0x4, fixed_abs, tag = 'smem constant byte address 0x4 - core index']
  #allocation1 [shape = 'u32[144,128]{1,0:T(1,128)}', space=vmem, size = 0x12000, scoped, tag = 'internal scratch']
  %s0 = inlined_call_operand.hbm [shape: f32[2,8,32], index: 0, kind: input, shape index: {}]
  %s1 = inlined_call_operand.hbm [shape: bf16[32,96], index: 1, kind: input, shape index: {}]
  %s2 = inlined_call_operand.hbm [shape: bf16[32,32], index: 2, kind: input, shape index: {}]
  %s3 = inlined_call_operand.vmem [shape: f32[1,32], index: 3, kind: input, shape index: {}]
  %s4 = inlined_call_operand.hbm [shape: f32[2,8,32], index: 4, kind: output, shape index: {0}]
  %s5 = inlined_call_operand.hbm [shape: f32[4,2,8,8], index: 5, kind: output, shape index: {1}]
  %6 = xla_tuple %s4, %s5
  %s7 = sld [smem:[#allocation0]]
  $region69: #{tpu_custom_call.1} parent=0
    _
  %s9 = ssub.s32 1, %s7
  %s10 = scalar_select 0, %s9, %s7
  $region1: #{tpu_custom_call.1} parent=0
    #allocation2 [shape = 'u8[8192]{0}', space=vmem, size = 0x2000, scoped, tag = 'input window, operand 0']
    #allocation3 [shape = 's32[2]{0}', space=sflag, size = 0x8, scoped, tag = 'scoped memory for tpu_custom_call.1']
    #allocation4 [shape = 's32[2]{0}', space=sflag, size = 0x8, scoped, tag = 'scoped memory for tpu_custom_call.1']
    #allocation5 [shape = 'u8[8192]{0}', space=vmem, size = 0x2000, scoped, tag = 'input window, operand 1, single buffered']
    #allocation6 [shape = 's32[1]{0}', space=sflag, size = 0x4, scoped, tag = 'scoped memory for tpu_custom_call.1']
    #allocation7 [shape = 'u8[8192]{0}', space=vmem, size = 0x2000, scoped, tag = 'input window, operand 2, single buffered']
    #allocation8 [shape = 'u8[8192]{0}', space=vmem, size = 0x2000, scoped, tag = 'output window, operand 0']
    #allocation9 [shape = 'u8[32768]{0}', space=vmem, size = 0x8000, scoped, tag = 'output window, operand 1']
    #allocation10 [shape = 's32[2]{0}', space=sflag, size = 0x8, scoped, tag = 'scoped memory for tpu_custom_call.1']
    %11 = vsyncpa [#allocation3], 0
    %s12 = scalar_lea.sflag [#allocation3], 1
    %13 = vsyncpa %s12, 0
    %14 = vsyncpa [#allocation6], 0
    %15 = vsyncpa [#allocation4], 0
    %s16 = scalar_lea.sflag [#allocation4], 1
    %17 = vsyncpa %s16, 0
    %18 = vsyncpa [#allocation10], 0
    %s19 = scalar_lea.sflag [#allocation10], 1
    %20 = vsyncpa %s19, 0
    loop: start=0, step=1, limit=4
    $region2: #{tpu_custom_call.1} parent=1 // loop_pre_header
      _
    $region3: #{tpu_custom_call.1} parent=1 // loop_header
      %s22 = sphi 0, %s26
      %p23 = scmp.ge.s32.totalorder %s22, 4
      %s32 = sphi 0, %s34
      %s35 = sphi 0, %s32
      %s36 = sphi 0, %s35
      %s52 = sphi 0, %s36
      %s56 = sphi 0, %s56
      %s58 = sphi 0, %s56
      %s59 = sphi 0, %s58
      %s73 = sphi 0, %s59
      %s77 = sphi 0, %s77
      %s79 = sphi 0, %s77
      %s80 = sphi 0, %s79
      %s94 = sphi 0, %s80
      %s98 = sphi 0, %s98
      %s100 = sphi 0, %s98
      %s101 = sphi 0, %s100
      %s115 = sphi 0, %s101
      %s121 = sphi 0, %s123
      %s124 = sphi 0, %s121
      %s125 = sphi 0, %s124
      %s141 = sphi 0, %s125
      %s147 = sphi 0, %s149
      %s150 = sphi 0, %s147
      %s151 = sphi 0, %s150
      %s167 = sphi 0, %s151
    $region4: #{tpu_custom_call.1} parent=1 // loop_header_branch
      %25 = sbr.rel (%p23) target = $region8
    $region5: #{tpu_custom_call.1} parent=1 // loop_body
      %s27 = ssub.s32 %s22, 1
      %s28 = ssub.s32 %s22, 2
      %s29 = sadd.s32 %s22, 1
      %s30 = ssub.s32 %s22, %s29
      %p31 = scmp.eq.s32.totalorder %s30, 0
      %s33 = sadd.s32 %s32, 1
      %s34 = scalar_select %p31, %s32, %s33
      %p37 = pneg %p31
      %p38 = scmp.eq.s32.totalorder %s22, 1
      %p39 = por %p37, %p38
      %p40 = scmp.ne.s32.totalorder %s32, %s35
      %p41 = scmp.eq.s32.totalorder %s22, 0
      %p42 = por %p40, %p41
      %p43 = scmp.ne.s32.totalorder %s32, %s35
      %p44 = scmp.eq.s32.totalorder %s27, 1
      %p45 = por %p43, %p44
      %p46 = scmp.ne.s32.totalorder %s35, %s36
      %p47 = scmp.eq.s32.totalorder %s27, 0
      %p48 = por %p46, %p47
      %p49 = scmp.ne.s32.totalorder %s35, %s36
      %p50 = scmp.eq.s32.totalorder %s28, 1
      %p51 = por %p49, %p50
      %p53 = scmp.ne.s32.totalorder %s36, %s52
      %p54 = scmp.eq.s32.totalorder %s28, 0
      %p55 = por %p53, %p54
      %s57 = sadd.s32 %s56, 1
      %p60 = scmp.eq.s32.totalorder %s22, 1
      %p61 = scmp.ne.s32.totalorder %s56, %s58
      %p62 = scmp.eq.s32.totalorder %s22, 0
      %p63 = por %p61, %p62
      %p64 = scmp.ne.s32.totalorder %s56, %s58
      %p65 = scmp.eq.s32.totalorder %s27, 1
      %p66 = por %p64, %p65
      %p67 = scmp.ne.s32.totalorder %s58, %s59
      %p68 = scmp.eq.s32.totalorder %s27, 0
      %p69 = por %p67, %p68
      %p70 = scmp.ne.s32.totalorder %s58, %s59
      %p71 = scmp.eq.s32.totalorder %s28, 1
      %p72 = por %p70, %p71
      %p74 = scmp.ne.s32.totalorder %s59, %s73
      %p75 = scmp.eq.s32.totalorder %s28, 0
      %p76 = por %p74, %p75
      %s78 = sadd.s32 %s77, 1
      %p81 = scmp.eq.s32.totalorder %s22, 1
      %p82 = scmp.ne.s32.totalorder %s77, %s79
      %p83 = scmp.eq.s32.totalorder %s22, 0
      %p84 = por %p82, %p83
      %p85 = scmp.ne.s32.totalorder %s77, %s79
      %p86 = scmp.eq.s32.totalorder %s27, 1
      %p87 = por %p85, %p86
      %p88 = scmp.ne.s32.totalorder %s79, %s80
      %p89 = scmp.eq.s32.totalorder %s27, 0
      %p90 = por %p88, %p89
      %p91 = scmp.ne.s32.totalorder %s79, %s80
      %p92 = scmp.eq.s32.totalorder %s28, 1
      %p93 = por %p91, %p92
      %p95 = scmp.ne.s32.totalorder %s80, %s94
      %p96 = scmp.eq.s32.totalorder %s28, 0
      %p97 = por %p95, %p96
      %s99 = sadd.s32 %s98, 1
      %p102 = scmp.eq.s32.totalorder %s22, 1
      %p103 = scmp.ne.s32.totalorder %s98, %s100
      %p104 = scmp.eq.s32.totalorder %s22, 0
      %p105 = por %p103, %p104
      %p106 = scmp.ne.s32.totalorder %s98, %s100
      %p107 = scmp.eq.s32.totalorder %s27, 1
      %p108 = por %p106, %p107
      %p109 = scmp.ne.s32.totalorder %s100, %s101
      %p110 = scmp.eq.s32.totalorder %s27, 0
      %p111 = por %p109, %p110
      %p112 = scmp.ne.s32.totalorder %s100, %s101
      %p113 = scmp.eq.s32.totalorder %s28, 1
      %p114 = por %p112, %p113
      %p116 = scmp.ne.s32.totalorder %s101, %s115
      %p117 = scmp.eq.s32.totalorder %s28, 0
      %p118 = por %p116, %p117
      %s119 = ssub.s32 %s22, %s29
      %p120 = scmp.eq.s32.totalorder %s119, 0
      %s122 = sadd.s32 %s121, 1
      %s123 = scalar_select %p120, %s121, %s122
      %p126 = pneg %p120
      %p127 = scmp.eq.s32.totalorder %s22, 1
      %p128 = por %p126, %p127
      %p129 = scmp.ne.s32.totalorder %s121, %s124
      %p130 = scmp.eq.s32.totalorder %s22, 0
      %p131 = por %p129, %p130
      %p132 = scmp.ne.s32.totalorder %s121, %s124
      %p133 = scmp.eq.s32.totalorder %s27, 1
      %p134 = por %p132, %p133
      %p135 = scmp.ne.s32.totalorder %s124, %s125
      %p136 = scmp.eq.s32.totalorder %s27, 0
      %p137 = por %p135, %p136
      %p138 = scmp.ne.s32.totalorder %s124, %s125
      %p139 = scmp.eq.s32.totalorder %s28, 1
      %p140 = por %p138, %p139
      %p142 = scmp.ne.s32.totalorder %s125, %s141
      %p143 = scmp.eq.s32.totalorder %s28, 0
      %p144 = por %p142, %p143
      %s145 = ssub.s32 %s22, %s29
      %p146 = scmp.eq.s32.totalorder %s145, 0
      %s148 = sadd.s32 %s147, 1
      %s149 = scalar_select %p146, %s147, %s148
      %p152 = pneg %p146
      %p153 = scmp.eq.s32.totalorder %s22, 1
      %p154 = por %p152, %p153
      %p155 = scmp.ne.s32.totalorder %s147, %s150
      %p156 = scmp.eq.s32.totalorder %s22, 0
      %p157 = por %p155, %p156
      %p158 = scmp.ne.s32.totalorder %s147, %s150
      %p159 = scmp.eq.s32.totalorder %s27, 1
      %p160 = por %p158, %p159
      %p161 = scmp.ne.s32.totalorder %s150, %s151
      %p162 = scmp.eq.s32.totalorder %s27, 0
      %p163 = por %p161, %p162
      %p164 = scmp.ne.s32.totalorder %s150, %s151
      %p165 = scmp.eq.s32.totalorder %s28, 1
      %p166 = por %p164, %p165
      %p168 = scmp.ne.s32.totalorder %s151, %s167
      %p169 = scmp.eq.s32.totalorder %s28, 0
      %p170 = por %p168, %p169
      %p171 = scmp.le.s32.totalorder 1, %s22
      %p172 = scmp.lt.s32.totalorder %s22, 3
      %p173 = pnand %p171, %p172
      %p174 = pneg %p173
      // Predicated region
      $region9: #{tpu_custom_call.1} parent=5 // pred_check
        _
      $region10: #{tpu_custom_call.1} parent=5 // pred_check_branch
        %176 = sbr.rel (%p173) target = $region12
      $region11: #{tpu_custom_call.1} parent=5 // pred_region
        %s177 = ssub.s32 %s22, 1
        // Predicated region
        $region13: #{tpu_custom_call.1} parent=11 // pred_check
          %p178 = pneg %p69
        $region14: #{tpu_custom_call.1} parent=11 // pred_check_branch
          %180 = sbr.rel (%p178) target = $region16
        $region15: #{tpu_custom_call.1} parent=11 // pred_region
          %s182 = ssub.s32 256, 256
          %183 = vsyncadd [#allocation6], %s182
          %s184 = sshll.u32 [#allocation5], 4
          %s185 = int_to_ptr.vmem [resolvable:$true] %s184
          %190 = dma.hbm_to_vmem [thread:$0]  %s1, 256, %s185, [#allocation6], 64, 64, 4
        $region16: #{tpu_custom_call.1} parent=11 // pred_fallthru
          _
        // Predicated region
        $region17: #{tpu_custom_call.1} parent=11 // pred_check
          %p191 = pneg %p90
        $region18: #{tpu_custom_call.1} parent=11 // pred_check_branch
          %193 = sbr.rel (%p191) target = $region20
        $region19: #{tpu_custom_call.1} parent=11 // pred_region
          %s195 = ssub.s32 256, 256
          %196 = vsyncadd [#allocation6], %s195
          %s197 = sshll.u32 [#allocation7], 4
          %s198 = int_to_ptr.vmem [resolvable:$true] %s197
          %203 = dma.hbm_to_vmem [thread:$0]  %s2, 256, %s198, [#allocation6], 64, 64, 4
        $region20: #{tpu_custom_call.1} parent=11 // pred_fallthru
          _
        // Predicated region
        $region21: #{tpu_custom_call.1} parent=11 // pred_check
          %p204 = pneg %p111
        $region22: #{tpu_custom_call.1} parent=11 // pred_check_branch
          %206 = sbr.rel (%p204) target = $region24
        $region23: #{tpu_custom_call.1} parent=11 // pred_region
          _
        $region24: #{tpu_custom_call.1} parent=11 // pred_fallthru
          _
      $region12: #{tpu_custom_call.1} parent=5 // pred_fallthru
        _
      %p207 = scmp.lt.s32.totalorder %s22, 2
      // Predicated region
      $region25: #{tpu_custom_call.1} parent=5 // pred_check
        %p208 = pneg %p207
      $region26: #{tpu_custom_call.1} parent=5 // pred_check_branch
        %210 = sbr.rel (%p208) target = $region28
      $region27: #{tpu_custom_call.1} parent=5 // pred_region
        // Predicated region
        $region29: #{tpu_custom_call.1} parent=27 // pred_check
          %p211 = pneg %p42
        $region30: #{tpu_custom_call.1} parent=27 // pred_check_branch
          %213 = sbr.rel (%p211) target = $region32
        $region31: #{tpu_custom_call.1} parent=27 // pred_region
          %s214 = sand.u32 %s32, 1
          %s215 = scalar_lea.sflag [#allocation3], %s214
          %s216 = sand.u32 %s32, 1
          %s217 = smul.addr %s216, 8
          %s218 = scalar_lea.vmem [#allocation2], %s217
          %s220 = ssub.s32 128, 128
          %221 = vsyncadd %s215, %s220
          %s222 = smul.addr %s22, 128
          %s223 = scalar_lea.hbm %s0, %s222
          %s225 = sshll.u32 %s218, 4
          %s226 = int_to_ptr.vmem [resolvable:$true] %s225
          %228 = dma.hbm_to_vmem [thread:$0]  %s223, 128, %s226, %s215
        $region32: #{tpu_custom_call.1} parent=27 // pred_fallthru
          _
      $region28: #{tpu_custom_call.1} parent=5 // pred_fallthru
        _
      %p229 = scmp.le.s32.totalorder 1, %s22
      %p230 = scmp.lt.s32.totalorder %s22, 3
      %p231 = pnand %p229, %p230
      %p232 = pneg %p231
      // Predicated region
      $region33: #{tpu_custom_call.1} parent=5 // pred_check
        _
      $region34: #{tpu_custom_call.1} parent=5 // pred_check_branch
        %234 = sbr.rel (%p231) target = $region36
      $region35: #{tpu_custom_call.1} parent=5 // pred_region
        %s235 = ssub.s32 %s22, 1
        %s236 = sand.u32 %s35, 1
        %s237 = scalar_lea.sflag [#allocation3], %s236
        %s238 = sand.u32 %s35, 1
        %s239 = smul.addr %s238, 8
        %s240 = scalar_lea.vmem [#allocation2], %s239
        // Predicated region
        $region37: #{tpu_custom_call.1} parent=35 // pred_check
          %p241 = pneg %p48
        $region38: #{tpu_custom_call.1} parent=35 // pred_check_branch
          %243 = sbr.rel (%p241) target = $region40
        $region39: #{tpu_custom_call.1} parent=35 // pred_region
          %244 = dma.done %s237, 128
        $region40: #{tpu_custom_call.1} parent=35 // pred_fallthru
          _
        // Predicated region
        $region41: #{tpu_custom_call.1} parent=35 // pred_check
          %p245 = pneg %p69
        $region42: #{tpu_custom_call.1} parent=35 // pred_check_branch
          %247 = sbr.rel (%p245) target = $region44
        $region43: #{tpu_custom_call.1} parent=35 // pred_region
          %248 = dma.done [#allocation6], 256
        $region44: #{tpu_custom_call.1} parent=35 // pred_fallthru
          _
        // Predicated region
        $region45: #{tpu_custom_call.1} parent=35 // pred_check
          %p249 = pneg %p90
        $region46: #{tpu_custom_call.1} parent=35 // pred_check_branch
          %251 = sbr.rel (%p249) target = $region48
        $region47: #{tpu_custom_call.1} parent=35 // pred_region
          %252 = dma.done [#allocation6], 256
        $region48: #{tpu_custom_call.1} parent=35 // pred_fallthru
          _
        %s253 = sand.u32 %s35, 1
        %s254 = scalar_lea.sflag [#allocation3], %s253
        %s255 = sand.u32 %s35, 1
        %s256 = smul.addr %s255, 8
        %s257 = scalar_lea.vmem [#allocation2], %s256
        %p258 = pneg %p48
        %p259 = pneg %p45
        %p260 = pneg %p69
        %p261 = pneg %p66
        %p262 = pneg %p90
        %p263 = pneg %p87
        %p264 = pneg %p111
        %p265 = pneg %p108
        %p266 = pneg %p137
        %p267 = pneg %p134
        %s268 = sand.u32 %s124, 1
        %s269 = scalar_lea.sflag [#allocation4], %s268
        %s270 = sand.u32 %s124, 1
        %s271 = smul.addr %s270, 8
        %s272 = scalar_lea.vmem [#allocation8], %s271
        %p273 = pneg %p163
        %p274 = pneg %p160
        %s275 = sand.u32 %s150, 1
        %s276 = scalar_lea.sflag [#allocation10], %s275
        %s277 = sand.u32 %s150, 1
        %s278 = smul.addr %s277, 32
        %s279 = scalar_lea.vmem [#allocation9], %s278
        %v281 = vld [vmem:[%s240] sm:$0xff]
        %v282 = vpack.c.bf16 %v281, %v281
        %v283 = vld [vmem:[#allocation5] sm:$0xf]
        %v284 = vld [vmem:[#allocation5 + $0x4] sm:$0xf]
        %v285 = vld [vmem:[#allocation5 + $0x8] sm:$0xf]
        %v286 = vld [vmem:[#allocation5 + $0xc] sm:$0xf]
        %v291 = vunpack.c.l.b16 %v283
        %v292 = vunpack.c.l.b16 %v284
        %v293 = vunpack.c.l.b16 %v285
        %v294 = vunpack.c.l.b16 %v286
        %v295 = vpack.c.b16 %v292, %v291
        %v296 = vpack.c.b16 %v294, %v293
        %vm299 = vcmask 261120
        %v301 = vsel %vm299, %v282, 0
        %303 = vmatprep.subr.bf16.mxu0 0
        %304 = vmatpush1.bf16.msra.mxu0 %v295
        %305 = vmatprep.subr.bf16.mxu0 0
        %306 = vmatpush1.bf16.msra.mxu0 %v296
        %307 = vmatprep.subr.bf16.mxu0 0
        %308 = vmatpush1.bf16.msra.mxu0 0
        %309 = vmatprep.subr.bf16.mxu0 0
        %310 = vmatpush1.bf16.msra.mxu0 0
        %311 = vmatprep.subr.bf16.mxu0 0
        %312 = vmatpush1.bf16.msra.mxu0 0
        %313 = vmatprep.subr.bf16.mxu0 0
        %314 = vmatpush1.bf16.msra.mxu0 0
        %315 = vmatprep.subr.bf16.mxu0 0
        %316 = vmatpush1.bf16.msra.mxu0 0
        %317 = vmatprep.subr.bf16.mxu0 0
        %318 = vmatpush1.bf16.msra.mxu0 0
        %319 = vmatprep.subr.bf16.mxu0 0
        %320 = vmatpush1.bf16.msra.mxu0 0
        %321 = vmatprep.subr.bf16.mxu0 0
        %322 = vmatpush1.bf16.msra.mxu0 0
        %323 = vmatprep.subr.bf16.mxu0 0
        %324 = vmatpush1.bf16.msra.mxu0 0
        %325 = vmatprep.subr.bf16.mxu0 0
        %326 = vmatpush1.bf16.msra.mxu0 0
        %327 = vmatprep.subr.bf16.mxu0 0
        %328 = vmatpush1.bf16.msra.mxu0 0
        %329 = vmatprep.subr.bf16.mxu0 0
        %330 = vmatpush1.bf16.msra.mxu0 0
        %331 = vmatprep.subr.bf16.mxu0 0
        %332 = vmatpush1.bf16.msra.mxu0 0
        %333 = vmatprep.subr.bf16.mxu0 0
        %334 = vmatpush1.bf16.msra.mxu0 0
        %335 = vmatprep.mubr.bf16.mxu0 0
        %336 = vmatmul.mubr.bf16.gmra.mrb[0].mxu0 %v301
        %v337 = vpop.f32.mrb[0].mxu0
        %v338 = vadd.f32 0.0, %v337
        %v339 = vpop.f32.mrb[0].mxu0
        %v340 = vpop.f32.mrb[0].mxu0
        %v341 = vpop.f32.mrb[0].mxu0
        %342 = vdwg.mxu0
        %344 = vrot.lane.b32.xlu0 %v338, 120
        %v345 = vpop.permute.xlu0 %344
        %347 = vrot.lane.b32.xlu0 %v338, 112
        %v348 = vpop.permute.xlu0 %347
        %350 = vrot.lane.b32.xlu0 %v338, 104
        %v351 = vpop.permute.xlu0 %350
        %v353 = vpack.c.bf16 %v338, %v338
        %v354 = vpack.c.bf16 %v345, %v345
        %v355 = vpack.c.bf16 %v348, %v348
        %v356 = vpack.c.bf16 %v351, %v351
        %358 = vrot.lane.b32.xlu0 %v353, 96
        %v359 = vpop.permute.xlu0 %358
        %vm360 = vcmask 64512
        %v362 = vsel %vm360, %v353, 0
        %v365 = vsel %vm360, %v359, 0
        %367 = vmatprep.subr.bf16.mxu0 0
        %368 = vmatpush1.bf16.xpose.msra.mxu0 %v365
        %369 = vmatprep.subr.bf16.mxu0 0
        %370 = vmatpush1.bf16.xpose.msra.mxu0 0
        %371 = vmatprep.subr.bf16.mxu0 0
        %372 = vmatpush1.bf16.xpose.msra.mxu0 0
        %373 = vmatprep.subr.bf16.mxu0 0
        %374 = vmatpush1.bf16.xpose.msra.mxu0 0
        %375 = vmatprep.subr.bf16.mxu0 0
        %376 = vmatpush1.bf16.xpose.msra.mxu0 0
        %377 = vmatprep.subr.bf16.mxu0 0
        %378 = vmatpush1.bf16.xpose.msra.mxu0 0
        %379 = vmatprep.subr.bf16.mxu0 0
        %380 = vmatpush1.bf16.xpose.msra.mxu0 0
        %381 = vmatprep.subr.bf16.mxu0 0
        %382 = vmatpush1.bf16.xpose.msra.mxu0 0
        %383 = vmatprep.subr.bf16.mxu0 0
        %384 = vmatpush1.bf16.xpose.msra.mxu0 0
        %385 = vmatprep.subr.bf16.mxu0 0
        %386 = vmatpush1.bf16.xpose.msra.mxu0 0
        %387 = vmatprep.subr.bf16.mxu0 0
        %388 = vmatpush1.bf16.xpose.msra.mxu0 0
        %389 = vmatprep.subr.bf16.mxu0 0
        %390 = vmatpush1.bf16.xpose.msra.mxu0 0
        %391 = vmatprep.subr.bf16.mxu0 0
        %392 = vmatpush1.bf16.xpose.msra.mxu0 0
        %393 = vmatprep.subr.bf16.mxu0 0
        %394 = vmatpush1.bf16.xpose.msra.mxu0 0
        %395 = vmatprep.subr.bf16.mxu0 0
        %396 = vmatpush1.bf16.xpose.msra.mxu0 0
        %397 = vmatprep.subr.bf16.mxu0 0
        %398 = vmatpush1.bf16.xpose.msra.mxu0 0
        %399 = vmatprep.mubr.bf16.mxu0 0
        %400 = vmatmul.mubr.bf16.gmra.mrb[0].mxu0 %v362
        %v401 = vpop.f32.mrb[0].mxu0
        %v402 = vadd.f32 0.0, %v401
        %v403 = vpop.f32.mrb[0].mxu0
        %v404 = vpop.f32.mrb[0].mxu0
        %v405 = vpop.f32.mrb[0].mxu0
        %406 = vdwg.mxu0
        %408 = vrot.lane.b32.xlu0 %v354, 96
        %v409 = vpop.permute.xlu0 %408
        %v411 = vsel %vm360, %v354, 0
        %v414 = vsel %vm360, %v409, 0
        %416 = vmatprep.subr.bf16.mxu0 0
        %417 = vmatpush1.bf16.xpose.msra.mxu0 %v414
        %418 = vmatprep.subr.bf16.mxu0 0
        %419 = vmatpush1.bf16.xpose.msra.mxu0 0
        %420 = vmatprep.subr.bf16.mxu0 0
        %421 = vmatpush1.bf16.xpose.msra.mxu0 0
        %422 = vmatprep.subr.bf16.mxu0 0
        %423 = vmatpush1.bf16.xpose.msra.mxu0 0
        %424 = vmatprep.subr.bf16.mxu0 0
        %425 = vmatpush1.bf16.xpose.msra.mxu0 0
        %426 = vmatprep.subr.bf16.mxu0 0
        %427 = vmatpush1.bf16.xpose.msra.mxu0 0
        %428 = vmatprep.subr.bf16.mxu0 0
        %429 = vmatpush1.bf16.xpose.msra.mxu0 0
        %430 = vmatprep.subr.bf16.mxu0 0
        %431 = vmatpush1.bf16.xpose.msra.mxu0 0
        %432 = vmatprep.subr.bf16.mxu0 0
        %433 = vmatpush1.bf16.xpose.msra.mxu0 0
        %434 = vmatprep.subr.bf16.mxu0 0
        %435 = vmatpush1.bf16.xpose.msra.mxu0 0
        %436 = vmatprep.subr.bf16.mxu0 0
        %437 = vmatpush1.bf16.xpose.msra.mxu0 0
        %438 = vmatprep.subr.bf16.mxu0 0
        %439 = vmatpush1.bf16.xpose.msra.mxu0 0
        %440 = vmatprep.subr.bf16.mxu0 0
        %441 = vmatpush1.bf16.xpose.msra.mxu0 0
        %442 = vmatprep.subr.bf16.mxu0 0
        %443 = vmatpush1.bf16.xpose.msra.mxu0 0
        %444 = vmatprep.subr.bf16.mxu0 0
        %445 = vmatpush1.bf16.xpose.msra.mxu0 0
        %446 = vmatprep.subr.bf16.mxu0 0
        %447 = vmatpush1.bf16.xpose.msra.mxu0 0
        %448 = vmatprep.mubr.bf16.mxu0 0
        %449 = vmatmul.mubr.bf16.gmra.mrb[0].mxu0 %v411
        %v450 = vpop.f32.mrb[0].mxu0
        %v451 = vadd.f32 0.0, %v450
        %v452 = vpop.f32.mrb[0].mxu0
        %v453 = vpop.f32.mrb[0].mxu0
        %v454 = vpop.f32.mrb[0].mxu0
        %455 = vdwg.mxu0
        %457 = vrot.lane.b32.xlu0 %v355, 96
        %v458 = vpop.permute.xlu0 %457
        %v460 = vsel %vm360, %v355, 0
        %v463 = vsel %vm360, %v458, 0
        %465 = vmatprep.subr.bf16.mxu0 0
        %466 = vmatpush1.bf16.xpose.msra.mxu0 %v463
        %467 = vmatprep.subr.bf16.mxu0 0
        %468 = vmatpush1.bf16.xpose.msra.mxu0 0
        %469 = vmatprep.subr.bf16.mxu0 0
        %470 = vmatpush1.bf16.xpose.msra.mxu0 0
        %471 = vmatprep.subr.bf16.mxu0 0
        %472 = vmatpush1.bf16.xpose.msra.mxu0 0
        %473 = vmatprep.subr.bf16.mxu0 0
        %474 = vmatpush1.bf16.xpose.msra.mxu0 0
        %475 = vmatprep.subr.bf16.mxu0 0
        %476 = vmatpush1.bf16.xpose.msra.mxu0 0
        %477 = vmatprep.subr.bf16.mxu0 0
        %478 = vmatpush1.bf16.xpose.msra.mxu0 0
        %479 = vmatprep.subr.bf16.mxu0 0
        %480 = vmatpush1.bf16.xpose.msra.mxu0 0
        %481 = vmatprep.subr.bf16.mxu0 0
        %482 = vmatpush1.bf16.xpose.msra.mxu0 0
        %483 = vmatprep.subr.bf16.mxu0 0
        %484 = vmatpush1.bf16.xpose.msra.mxu0 0
        %485 = vmatprep.subr.bf16.mxu0 0
        %486 = vmatpush1.bf16.xpose.msra.mxu0 0
        %487 = vmatprep.subr.bf16.mxu0 0
        %488 = vmatpush1.bf16.xpose.msra.mxu0 0
        %489 = vmatprep.subr.bf16.mxu0 0
        %490 = vmatpush1.bf16.xpose.msra.mxu0 0
        %491 = vmatprep.subr.bf16.mxu0 0
        %492 = vmatpush1.bf16.xpose.msra.mxu0 0
        %493 = vmatprep.subr.bf16.mxu0 0
        %494 = vmatpush1.bf16.xpose.msra.mxu0 0
        %495 = vmatprep.subr.bf16.mxu0 0
        %496 = vmatpush1.bf16.xpose.msra.mxu0 0
        %497 = vmatprep.mubr.bf16.mxu0 0
        %498 = vmatmul.mubr.bf16.gmra.mrb[0].mxu0 %v460
        %v499 = vpop.f32.mrb[0].mxu0
        %v500 = vadd.f32 0.0, %v499
        %v501 = vpop.f32.mrb[0].mxu0
        %v502 = vpop.f32.mrb[0].mxu0
        %v503 = vpop.f32.mrb[0].mxu0
        %504 = vdwg.mxu0
        %506 = vrot.lane.b32.xlu0 %v356, 96
        %v507 = vpop.permute.xlu0 %506
        %v509 = vsel %vm360, %v356, 0
        %v512 = vsel %vm360, %v507, 0
        %514 = vmatprep.subr.bf16.mxu0 0
        %515 = vmatpush1.bf16.xpose.msra.mxu0 %v512
        %516 = vmatprep.subr.bf16.mxu0 0
        %517 = vmatpush1.bf16.xpose.msra.mxu0 0
        %518 = vmatprep.subr.bf16.mxu0 0
        %519 = vmatpush1.bf16.xpose.msra.mxu0 0
        %520 = vmatprep.subr.bf16.mxu0 0
        %521 = vmatpush1.bf16.xpose.msra.mxu0 0
        %522 = vmatprep.subr.bf16.mxu0 0
        %523 = vmatpush1.bf16.xpose.msra.mxu0 0
        %524 = vmatprep.subr.bf16.mxu0 0
        %525 = vmatpush1.bf16.xpose.msra.mxu0 0
        %526 = vmatprep.subr.bf16.mxu0 0
        %527 = vmatpush1.bf16.xpose.msra.mxu0 0
        %528 = vmatprep.subr.bf16.mxu0 0
        %529 = vmatpush1.bf16.xpose.msra.mxu0 0
        %530 = vmatprep.subr.bf16.mxu0 0
        %531 = vmatpush1.bf16.xpose.msra.mxu0 0
        %532 = vmatprep.subr.bf16.mxu0 0
        %533 = vmatpush1.bf16.xpose.msra.mxu0 0
        %534 = vmatprep.subr.bf16.mxu0 0
        %535 = vmatpush1.bf16.xpose.msra.mxu0 0
        %536 = vmatprep.subr.bf16.mxu0 0
        %537 = vmatpush1.bf16.xpose.msra.mxu0 0
        %538 = vmatprep.subr.bf16.mxu0 0
        %539 = vmatpush1.bf16.xpose.msra.mxu0 0
        %540 = vmatprep.subr.bf16.mxu0 0
        %541 = vmatpush1.bf16.xpose.msra.mxu0 0
        %542 = vmatprep.subr.bf16.mxu0 0
        %543 = vmatpush1.bf16.xpose.msra.mxu0 0
        %544 = vmatprep.subr.bf16.mxu0 0
        %545 = vmatpush1.bf16.xpose.msra.mxu0 0
        %546 = vmatprep.mubr.bf16.mxu0 0
        %547 = vmatmul.mubr.bf16.gmra.mrb[0].mxu0 %v509
        %v548 = vpop.f32.mrb[0].mxu0
        %v549 = vadd.f32 0.0, %v548
        %v550 = vpop.f32.mrb[0].mxu0
        %v551 = vpop.f32.mrb[0].mxu0
        %v552 = vpop.f32.mrb[0].mxu0
        %553 = vdwg.mxu0
        %v554 = vmul.f32 %v402, 0.35355338
        %v555 = vmul.f32 %v451, 0.35355338
        %v556 = vmul.f32 %v500, 0.35355338
        %v557 = vmul.f32 %v549, 0.35355338
        %v558 = vsel %vm360, %v554, -inf
        %559 = vmax.xlane.f32.xlu0 %v558
        %v560 = vpop.xlane.xlu0 %559
        %v561 = vsel %vm360, %v555, -inf
        %562 = vmax.xlane.f32.xlu0 %v561
        %v563 = vpop.xlane.xlu0 %562
        %v564 = vsel %vm360, %v556, -inf
        %565 = vmax.xlane.f32.xlu0 %v564
        %v566 = vpop.xlane.xlu0 %565
        %v567 = vsel %vm360, %v557, -inf
        %568 = vmax.xlane.f32.xlu0 %v567
        %v569 = vpop.xlane.xlu0 %568
        %v570 = vsub.f32 %v554, %v560
        %v571 = vsub.f32 %v555, %v563
        %v572 = vsub.f32 %v556, %v566
        %v573 = vsub.f32 %v557, %v569
        %v574 = vmul.f32 %v570, 1.442695
        %v575 = vpow.pop %v574
        %v576 = vmul.f32 %v571, 1.442695
        %v577 = vpow.pop %v576
        %v578 = vmul.f32 %v572, 1.442695
        %v579 = vpow.pop %v578
        %v580 = vmul.f32 %v573, 1.442695
        %v581 = vpow.pop %v580
        %v582 = vsel %vm360, %v575, 0.0
        %583 = vadd.xlane.f32.xlu0 %v582
        %v584 = vpop.xlane.xlu0 %583
        %v585 = vsel %vm360, %v577, 0.0
        %586 = vadd.xlane.f32.xlu0 %v585
        %v587 = vpop.xlane.xlu0 %586
        %v588 = vsel %vm360, %v579, 0.0
        %589 = vadd.xlane.f32.xlu0 %v588
        %v590 = vpop.xlane.xlu0 %589
        %v591 = vsel %vm360, %v581, 0.0
        %592 = vadd.xlane.f32.xlu0 %v591
        %v593 = vpop.xlane.xlu0 %592
        %v594 = vrcp.pop %v584
        %v595 = vrcp.pop %v587
        %v596 = vrcp.pop %v590
        %v597 = vrcp.pop %v593
        %v598 = vmul.f32 %v575, %v594
        %v599 = vmul.f32 %v577, %v595
        %v600 = vmul.f32 %v579, %v596
        %v601 = vmul.f32 %v581, %v597
        %602 = vst.msk [vmem:[%s279] sm:$0xff] %vm360, %v598
        %603 = vst.msk [vmem:[%s279 + $0x8] sm:$0xff] %vm360, %v599
        %604 = vst.msk [vmem:[%s279 + $0x10] sm:$0xff] %vm360, %v600
        %605 = vst.msk [vmem:[%s279 + $0x18] sm:$0xff] %vm360, %v601
        %v606 = vpack.c.bf16 %v598, %v598
        %v607 = vpack.c.bf16 %v599, %v599
        %v608 = vpack.c.bf16 %v600, %v600
        %v609 = vpack.c.bf16 %v601, %v601
        %610 = vrot.lane.b32.xlu0 %v353, 64
        %v611 = vpop.permute.xlu0 %610
        %v613 = vsel %vm360, %v606, 0
        %vm615 = vcmask 1043456
        %v617 = vsel %vm615, %v611, 0
        %619 = vmatprep.subr.bf16.mxu0 0
        %620 = vmatpush1.bf16.msra.mxu0 %v617
        %621 = vmatprep.subr.bf16.mxu0 0
        %622 = vmatpush1.bf16.msra.mxu0 0
        %623 = vmatprep.subr.bf16.mxu0 0
        %624 = vmatpush1.bf16.msra.mxu0 0
        %625 = vmatprep.subr.bf16.mxu0 0
        %626 = vmatpush1.bf16.msra.mxu0 0
        %627 = vmatprep.subr.bf16.mxu0 0
        %628 = vmatpush1.bf16.msra.mxu0 0
        %629 = vmatprep.subr.bf16.mxu0 0
        %630 = vmatpush1.bf16.msra.mxu0 0
        %631 = vmatprep.subr.bf16.mxu0 0
        %632 = vmatpush1.bf16.msra.mxu0 0
        %633 = vmatprep.subr.bf16.mxu0 0
        %634 = vmatpush1.bf16.msra.mxu0 0
        %635 = vmatprep.subr.bf16.mxu0 0
        %636 = vmatpush1.bf16.msra.mxu0 0
        %637 = vmatprep.subr.bf16.mxu0 0
        %638 = vmatpush1.bf16.msra.mxu0 0
        %639 = vmatprep.subr.bf16.mxu0 0
        %640 = vmatpush1.bf16.msra.mxu0 0
        %641 = vmatprep.subr.bf16.mxu0 0
        %642 = vmatpush1.bf16.msra.mxu0 0
        %643 = vmatprep.subr.bf16.mxu0 0
        %644 = vmatpush1.bf16.msra.mxu0 0
        %645 = vmatprep.subr.bf16.mxu0 0
        %646 = vmatpush1.bf16.msra.mxu0 0
        %647 = vmatprep.subr.bf16.mxu0 0
        %648 = vmatpush1.bf16.msra.mxu0 0
        %649 = vmatprep.subr.bf16.mxu0 0
        %650 = vmatpush1.bf16.msra.mxu0 0
        %651 = vmatprep.mubr.bf16.mxu0 0
        %652 = vmatmul.mubr.bf16.gmra.mrb[0].mxu0 %v613
        %v653 = vpop.f32.mrb[0].mxu0
        %v654 = vadd.f32 0.0, %v653
        %v655 = vpop.f32.mrb[0].mxu0
        %v656 = vpop.f32.mrb[0].mxu0
        %v657 = vpop.f32.mrb[0].mxu0
        %658 = vdwg.mxu0
        %659 = vrot.lane.b32.xlu0 %v354, 64
        %v660 = vpop.permute.xlu0 %659
        %v662 = vsel %vm360, %v607, 0
        %v665 = vsel %vm615, %v660, 0
        %667 = vmatprep.subr.bf16.mxu0 0
        %668 = vmatpush1.bf16.msra.mxu0 %v665
        %669 = vmatprep.subr.bf16.mxu0 0
        %670 = vmatpush1.bf16.msra.mxu0 0
        %671 = vmatprep.subr.bf16.mxu0 0
        %672 = vmatpush1.bf16.msra.mxu0 0
        %673 = vmatprep.subr.bf16.mxu0 0
        %674 = vmatpush1.bf16.msra.mxu0 0
        %675 = vmatprep.subr.bf16.mxu0 0
        %676 = vmatpush1.bf16.msra.mxu0 0
        %677 = vmatprep.subr.bf16.mxu0 0
        %678 = vmatpush1.bf16.msra.mxu0 0
        %679 = vmatprep.subr.bf16.mxu0 0
        %680 = vmatpush1.bf16.msra.mxu0 0
        %681 = vmatprep.subr.bf16.mxu0 0
        %682 = vmatpush1.bf16.msra.mxu0 0
        %683 = vmatprep.subr.bf16.mxu0 0
        %684 = vmatpush1.bf16.msra.mxu0 0
        %685 = vmatprep.subr.bf16.mxu0 0
        %686 = vmatpush1.bf16.msra.mxu0 0
        %687 = vmatprep.subr.bf16.mxu0 0
        %688 = vmatpush1.bf16.msra.mxu0 0
        %689 = vmatprep.subr.bf16.mxu0 0
        %690 = vmatpush1.bf16.msra.mxu0 0
        %691 = vmatprep.subr.bf16.mxu0 0
        %692 = vmatpush1.bf16.msra.mxu0 0
        %693 = vmatprep.subr.bf16.mxu0 0
        %694 = vmatpush1.bf16.msra.mxu0 0
        %695 = vmatprep.subr.bf16.mxu0 0
        %696 = vmatpush1.bf16.msra.mxu0 0
        %697 = vmatprep.subr.bf16.mxu0 0
        %698 = vmatpush1.bf16.msra.mxu0 0
        %699 = vmatprep.mubr.bf16.mxu0 0
        %700 = vmatmul.mubr.bf16.gmra.mrb[0].mxu0 %v662
        %v701 = vpop.f32.mrb[0].mxu0
        %v702 = vadd.f32 0.0, %v701
        %v703 = vpop.f32.mrb[0].mxu0
        %v704 = vpop.f32.mrb[0].mxu0
        %v705 = vpop.f32.mrb[0].mxu0
        %706 = vdwg.mxu0
        %707 = vrot.lane.b32.xlu0 %v355, 64
        %v708 = vpop.permute.xlu0 %707
        %v710 = vsel %vm360, %v608, 0
        %v713 = vsel %vm615, %v708, 0
        %715 = vmatprep.subr.bf16.mxu0 0
        %716 = vmatpush1.bf16.msra.mxu0 %v713
        %717 = vmatprep.subr.bf16.mxu0 0
        %718 = vmatpush1.bf16.msra.mxu0 0
        %719 = vmatprep.subr.bf16.mxu0 0
        %720 = vmatpush1.bf16.msra.mxu0 0
        %721 = vmatprep.subr.bf16.mxu0 0
        %722 = vmatpush1.bf16.msra.mxu0 0
        %723 = vmatprep.subr.bf16.mxu0 0
        %724 = vmatpush1.bf16.msra.mxu0 0
        %725 = vmatprep.subr.bf16.mxu0 0
        %726 = vmatpush1.bf16.msra.mxu0 0
        %727 = vmatprep.subr.bf16.mxu0 0
        %728 = vmatpush1.bf16.msra.mxu0 0
        %729 = vmatprep.subr.bf16.mxu0 0
        %730 = vmatpush1.bf16.msra.mxu0 0
        %731 = vmatprep.subr.bf16.mxu0 0
        %732 = vmatpush1.bf16.msra.mxu0 0
        %733 = vmatprep.subr.bf16.mxu0 0
        %734 = vmatpush1.bf16.msra.mxu0 0
        %735 = vmatprep.subr.bf16.mxu0 0
        %736 = vmatpush1.bf16.msra.mxu0 0
        %737 = vmatprep.subr.bf16.mxu0 0
        %738 = vmatpush1.bf16.msra.mxu0 0
        %739 = vmatprep.subr.bf16.mxu0 0
        %740 = vmatpush1.bf16.msra.mxu0 0
        %741 = vmatprep.subr.bf16.mxu0 0
        %742 = vmatpush1.bf16.msra.mxu0 0
        %743 = vmatprep.subr.bf16.mxu0 0
        %744 = vmatpush1.bf16.msra.mxu0 0
        %745 = vmatprep.subr.bf16.mxu0 0
        %746 = vmatpush1.bf16.msra.mxu0 0
        %747 = vmatprep.mubr.bf16.mxu0 0
        %748 = vmatmul.mubr.bf16.gmra.mrb[0].mxu0 %v710
        %v749 = vpop.f32.mrb[0].mxu0
        %v750 = vadd.f32 0.0, %v749
        %v751 = vpop.f32.mrb[0].mxu0
        %v752 = vpop.f32.mrb[0].mxu0
        %v753 = vpop.f32.mrb[0].mxu0
        %754 = vdwg.mxu0
        %755 = vrot.lane.b32.xlu0 %v356, 64
        %v756 = vpop.permute.xlu0 %755
        %v758 = vsel %vm360, %v609, 0
        %v761 = vsel %vm615, %v756, 0
        %763 = vmatprep.subr.bf16.mxu0 0
        %764 = vmatpush1.bf16.msra.mxu0 %v761
        %765 = vmatprep.subr.bf16.mxu0 0
        %766 = vmatpush1.bf16.msra.mxu0 0
        %767 = vmatprep.subr.bf16.mxu0 0
        %768 = vmatpush1.bf16.msra.mxu0 0
        %769 = vmatprep.subr.bf16.mxu0 0
        %770 = vmatpush1.bf16.msra.mxu0 0
        %771 = vmatprep.subr.bf16.mxu0 0
        %772 = vmatpush1.bf16.msra.mxu0 0
        %773 = vmatprep.subr.bf16.mxu0 0
        %774 = vmatpush1.bf16.msra.mxu0 0
        %775 = vmatprep.subr.bf16.mxu0 0
        %776 = vmatpush1.bf16.msra.mxu0 0
        %777 = vmatprep.subr.bf16.mxu0 0
        %778 = vmatpush1.bf16.msra.mxu0 0
        %779 = vmatprep.subr.bf16.mxu0 0
        %780 = vmatpush1.bf16.msra.mxu0 0
        %781 = vmatprep.subr.bf16.mxu0 0
        %782 = vmatpush1.bf16.msra.mxu0 0
        %783 = vmatprep.subr.bf16.mxu0 0
        %784 = vmatpush1.bf16.msra.mxu0 0
        %785 = vmatprep.subr.bf16.mxu0 0
        %786 = vmatpush1.bf16.msra.mxu0 0
        %787 = vmatprep.subr.bf16.mxu0 0
        %788 = vmatpush1.bf16.msra.mxu0 0
        %789 = vmatprep.subr.bf16.mxu0 0
        %790 = vmatpush1.bf16.msra.mxu0 0
        %791 = vmatprep.subr.bf16.mxu0 0
        %792 = vmatpush1.bf16.msra.mxu0 0
        %793 = vmatprep.subr.bf16.mxu0 0
        %794 = vmatpush1.bf16.msra.mxu0 0
        %795 = vmatprep.mubr.bf16.mxu0 0
        %796 = vmatmul.mubr.bf16.gmra.mrb[0].mxu0 %v758
        %v797 = vpop.f32.mrb[0].mxu0
        %v798 = vadd.f32 0.0, %v797
        %v799 = vpop.f32.mrb[0].mxu0
        %v800 = vpop.f32.mrb[0].mxu0
        %v801 = vpop.f32.mrb[0].mxu0
        %802 = vdwg.mxu0
        %804 = vrot.lane.b32.xlu0 %v702, 8
        %v805 = vpop.permute.xlu0 %804
        %808 = vrot.lane.b32.xlu0 %v750, 16
        %v809 = vpop.permute.xlu0 %808
        %812 = vrot.lane.b32.xlu0 %v798, 24
        %v813 = vpop.permute.xlu0 %812
        %v815 = vsel %vm360, %v654, %v805
        %vm816 = vcmask 130048
        %v817 = vsel %vm816, %v815, %v809
        %vm818 = vcmask 195584
        %v819 = vsel %vm818, %v817, %v813
        %v820 = vpack.c.bf16 %v819, %v819
        %v821 = vld [vmem:[#allocation7] sm:$0xf]
        %v822 = vld [vmem:[#allocation7 + $0x4] sm:$0xf]
        %v823 = vld [vmem:[#allocation7 + $0x8] sm:$0xf]
        %v824 = vld [vmem:[#allocation7 + $0xc] sm:$0xf]
        %v825 = vld [vmem:[%s3] sm:$0x1]
        %v827 = vlaneseq
        %v828 = vshrl.u32 %v827, 7
        %v829 = vsub.s32 0, %v828
        %v830 = vrot.slane %v825, %v829
        %v836 = vunpack.c.l.b16 %v821
        %v837 = vunpack.c.l.b16 %v822
        %v838 = vunpack.c.l.b16 %v823
        %v839 = vunpack.c.l.b16 %v824
        %v840 = vpack.c.b16 %v837, %v836
        %v841 = vpack.c.b16 %v839, %v838
        %v845 = vsel %vm299, %v820, 0
        %847 = vmatprep.subr.bf16.mxu0 0
        %848 = vmatpush1.bf16.msra.mxu0 %v840
        %849 = vmatprep.subr.bf16.mxu0 0
        %850 = vmatpush1.bf16.msra.mxu0 %v841
        %851 = vmatprep.subr.bf16.mxu0 0
        %852 = vmatpush1.bf16.msra.mxu0 0
        %853 = vmatprep.subr.bf16.mxu0 0
        %854 = vmatpush1.bf16.msra.mxu0 0
        %855 = vmatprep.subr.bf16.mxu0 0
        %856 = vmatpush1.bf16.msra.mxu0 0
        %857 = vmatprep.subr.bf16.mxu0 0
        %858 = vmatpush1.bf16.msra.mxu0 0
        %859 = vmatprep.subr.bf16.mxu0 0
        %860 = vmatpush1.bf16.msra.mxu0 0
        %861 = vmatprep.subr.bf16.mxu0 0
        %862 = vmatpush1.bf16.msra.mxu0 0
        %863 = vmatprep.subr.bf16.mxu0 0
        %864 = vmatpush1.bf16.msra.mxu0 0
        %865 = vmatprep.subr.bf16.mxu0 0
        %866 = vmatpush1.bf16.msra.mxu0 0
        %867 = vmatprep.subr.bf16.mxu0 0
        %868 = vmatpush1.bf16.msra.mxu0 0
        %869 = vmatprep.subr.bf16.mxu0 0
        %870 = vmatpush1.bf16.msra.mxu0 0
        %871 = vmatprep.subr.bf16.mxu0 0
        %872 = vmatpush1.bf16.msra.mxu0 0
        %873 = vmatprep.subr.bf16.mxu0 0
        %874 = vmatpush1.bf16.msra.mxu0 0
        %875 = vmatprep.subr.bf16.mxu0 0
        %876 = vmatpush1.bf16.msra.mxu0 0
        %877 = vmatprep.subr.bf16.mxu0 0
        %878 = vmatpush1.bf16.msra.mxu0 0
        %879 = vmatprep.mubr.bf16.mxu0 0
        %880 = vmatmul.mubr.bf16.gmra.mrb[0].mxu0 %v845
        %v881 = vpop.f32.mrb[0].mxu0
        %v882 = vadd.f32 %v830, %v881
        %v883 = vpop.f32.mrb[0].mxu0
        %v884 = vpop.f32.mrb[0].mxu0
        %v885 = vpop.f32.mrb[0].mxu0
        %886 = vdwg.mxu0
        %887 = vst.msk [vmem:[%s272] sm:$0xff] %vm299, %v882
        %s888 = sand.u32 %s124, 1
        %s889 = scalar_lea.sflag [#allocation4], %s888
        %s890 = sand.u32 %s124, 1
        %s891 = smul.addr %s890, 8
        %s892 = scalar_lea.vmem [#allocation8], %s891
        %s893 = sand.u32 %s150, 1
        %s894 = scalar_lea.sflag [#allocation10], %s893
        %s895 = sand.u32 %s150, 1
        %s896 = smul.addr %s895, 32
        %s897 = scalar_lea.vmem [#allocation9], %s896
        // Predicated region
        $region49: #{tpu_custom_call.1} parent=35 // pred_check
          %p898 = pneg %p134
        $region50: #{tpu_custom_call.1} parent=35 // pred_check_branch
          %900 = sbr.rel (%p898) target = $region52
        $region51: #{tpu_custom_call.1} parent=35 // pred_region
          %s902 = ssub.s32 128, 128
          %903 = vsyncadd %s889, %s902
          %s904 = smul.addr %s27, 128
          %s905 = scalar_lea.hbm %s4, %s904
          %s907 = sshll.u32 %s892, 4
          %s908 = int_to_ptr.vmem [resolvable:$true] %s907
          %910 = dma.vmem_to_hbm [thread:$0]  %s908, 128, %s905, %s889
        $region52: #{tpu_custom_call.1} parent=35 // pred_fallthru
          _
        // Predicated region
        $region53: #{tpu_custom_call.1} parent=35 // pred_check
          %p911 = pneg %p160
        $region54: #{tpu_custom_call.1} parent=35 // pred_check_branch
          %913 = sbr.rel (%p911) target = $region56
        $region55: #{tpu_custom_call.1} parent=35 // pred_region
          %s915 = ssub.s32 512, 512
          %916 = vsyncadd %s894, %s915
          %s917 = smul.addr %s27, 128
          %s918 = scalar_lea.hbm %s5, %s917
          %s919 = sshll.u32 %s897, 4
          %s920 = int_to_ptr.vmem [resolvable:$true] %s919
          %925 = dma.vmem_to_hbm [thread:$0]  %s920, 512, %s918, %s894, 128, 256, 8
        $region56: #{tpu_custom_call.1} parent=35 // pred_fallthru
          _
      $region36: #{tpu_custom_call.1} parent=5 // pred_fallthru
        _
      %p926 = scmp.le.s32.totalorder 2, %s22
      // Predicated region
      $region57: #{tpu_custom_call.1} parent=5 // pred_check
        %p927 = pneg %p926
      $region58: #{tpu_custom_call.1} parent=5 // pred_check_branch
        %929 = sbr.rel (%p927) target = $region60
      $region59: #{tpu_custom_call.1} parent=5 // pred_region
        %s930 = ssub.s32 %s22, 2
        // Predicated region
        $region61: #{tpu_custom_call.1} parent=59 // pred_check
          %p931 = pneg %p140
        $region62: #{tpu_custom_call.1} parent=59 // pred_check_branch
          %933 = sbr.rel (%p931) target = $region64
        $region63: #{tpu_custom_call.1} parent=59 // pred_region
          %s934 = sand.u32 %s125, 1
          %s935 = scalar_lea.sflag [#allocation4], %s934
          %s936 = sand.u32 %s125, 1
          %s937 = smul.addr %s936, 8
          %s938 = scalar_lea.vmem [#allocation8], %s937
          %939 = dma.done %s935, 128
        $region64: #{tpu_custom_call.1} parent=59 // pred_fallthru
          _
        // Predicated region
        $region65: #{tpu_custom_call.1} parent=59 // pred_check
          %p940 = pneg %p166
        $region66: #{tpu_custom_call.1} parent=59 // pred_check_branch
          %942 = sbr.rel (%p940) target = $region68
        $region67: #{tpu_custom_call.1} parent=59 // pred_region
          %s943 = sand.u32 %s151, 1
          %s944 = scalar_lea.sflag [#allocation10], %s943
          %s945 = sand.u32 %s151, 1
          %s946 = smul.addr %s945, 32
          %s947 = scalar_lea.vmem [#allocation9], %s946
          %948 = dma.done %s944, 512
        $region68: #{tpu_custom_call.1} parent=59 // pred_fallthru
          _
      $region60: #{tpu_custom_call.1} parent=5 // pred_fallthru
        _
    $region6: #{tpu_custom_call.1} parent=1 // loop_footer
      %s26 = sadd.s32 1, %s22
    $region7: #{tpu_custom_call.1} parent=1 // loop_footer_branch
      %21 = sbr.rel target = $region3
    $region8: #{tpu_custom_call.1} parent=1 // loop_exit
      _
    %949 = vsyncpa [#allocation3], 1
    %s950 = scalar_lea.sflag [#allocation3], 1
    %951 = vsyncpa %s950, 1
    %952 = vsyncpa [#allocation6], 1
    %953 = vsyncpa [#allocation4], 1
    %s954 = scalar_lea.sflag [#allocation4], 1
    %955 = vsyncpa %s954, 1
    %956 = vsyncpa [#allocation10], 1
    %s957 = scalar_lea.sflag [#allocation10], 1
    %958 = vsyncpa %s957, 1

</llo_original>
